<compile_context>
chip_gen: v7x
topology: tpu7x:2x2x1
jax: 0.10.0
libtpu: 0.0.40
codegen_flags: <defaults>
</compile_context>

<pallas_src>
import functools

import jax
import jax.numpy as jnp
from jax.experimental import pallas as pl
from jax.experimental.pallas import tpu as pltpu

_EPS = 1e-5
_LANE = 128


def _stats_kernel(x_ref, sum_ref, sumsq_ref, acc_sum, acc_sq, *, num_chunks):
    # x_ref: (1, tc, tl) tile of x.  Outputs: per-channel (tc, 1) sum and sum-of-squares.
    n = pl.program_id(1)
    li = pl.program_id(2)

    @pl.when(jnp.logical_and(n == 0, li == 0))
    def _init():
        acc_sum[...] = jnp.zeros_like(acc_sum)
        acc_sq[...] = jnp.zeros_like(acc_sq)

    x = x_ref[0].astype(jnp.float32)  # (tc, tl), f32 accumulation

    if num_chunks > 0:
        # Lane-parallel partials: VPU adds over aligned 128-wide chunks; defer the
        # cross-lane (XLU) reduce to the finalize step.
        ps = acc_sum[...]
        pq = acc_sq[...]
        for k in range(num_chunks):
            c = x[:, k * _LANE:(k + 1) * _LANE]
            ps = ps + c
            pq = pq + c * c
        acc_sum[...] = ps
        acc_sq[...] = pq
    else:
        # Tile width not a multiple of 128: reduce across lanes per tile instead.
        acc_sum[:, 0:1] = acc_sum[:, 0:1] + jnp.sum(x, axis=-1, keepdims=True)
        acc_sq[:, 0:1] = acc_sq[:, 0:1] + jnp.sum(x * x, axis=-1, keepdims=True)

    @pl.when(jnp.logical_and(n == pl.num_programs(1) - 1,
                             li == pl.num_programs(2) - 1))
    def _finalize():
        sum_ref[...] = jnp.sum(acc_sum[...], axis=-1, keepdims=True)
        sumsq_ref[...] = jnp.sum(acc_sq[...], axis=-1, keepdims=True)


def _norm_kernel(x_ref, scale_ref, shift_ref, o_ref):
    # y = x * scale_c + shift_c  (affine + normalization folded per channel)
    x = x_ref[...].astype(jnp.float32)      # (1, tc, tl)
    scale = scale_ref[...]                  # (tc, 1) f32
    shift = shift_ref[...]                  # (tc, 1) f32
    o_ref[...] = (x * scale[None, :, :] + shift[None, :, :]).astype(o_ref.dtype)


def _pick_tile(dim, align, cap):
    """Largest divisor of `dim` that is a multiple of `align` and <= cap; else `dim`."""
    best = None
    d = align
    top = min(dim, cap)
    while d <= top:
        if dim % d == 0:
            best = d
        d += align
    return best if best is not None else dim


def feature_normalization(x, gamma, beta):
    """BatchNorm2d forward with batch stats. x: (N,C,H,W); gamma, beta: (C,)."""
    N, C, H, W = x.shape
    L = H * W
    x3 = x.reshape(N, C, L)                 # free, contiguous reshape (no transpose)

    tc = _pick_tile(C, 8, 64)               # channel tile (sublane axis)
    tl = _pick_tile(L, _LANE, 2048)         # spatial tile (lane-dense axis)
    nc = C // tc
    nl = L // tl
    num_chunks = tl // _LANE if tl % _LANE == 0 else 0

    # ---- pass 1: per-channel sum and sum-of-squares (f32) ----
    sums, sumsqs = pl.pallas_call(
        functools.partial(_stats_kernel, num_chunks=num_chunks),
        out_shape=(jax.ShapeDtypeStruct((C, 1), jnp.float32),
                   jax.ShapeDtypeStruct((C, 1), jnp.float32)),
        grid=(nc, N, nl),
        in_specs=[pl.BlockSpec((1, tc, tl), lambda ci, n, li: (n, ci, li))],
        out_specs=(pl.BlockSpec((tc, 1), lambda ci, n, li: (ci, 0)),
                   pl.BlockSpec((tc, 1), lambda ci, n, li: (ci, 0))),
        scratch_shapes=[pltpu.VMEM((tc, _LANE), jnp.float32),
                        pltpu.VMEM((tc, _LANE), jnp.float32)],
        compiler_params=pltpu.CompilerParams(
            dimension_semantics=("parallel", "arbitrary", "arbitrary")),
    )(x3)

    # ---- fold into per-channel scale/shift (tiny, O(C), f32, clamped variance) ----
    count = jnp.float32(N * L)
    mean = sums / count
    var = jnp.maximum(sumsqs / count - mean * mean, 0.0)
    inv_std = jax.lax.rsqrt(var + _EPS)
    scale = gamma.reshape(C, 1).astype(jnp.float32) * inv_std
    shift = beta.reshape(C, 1).astype(jnp.float32) - mean * scale

    # ---- pass 2: normalize + affine ----
    y3 = pl.pallas_call(
        _norm_kernel,
        out_shape=jax.ShapeDtypeStruct((N, C, L), x.dtype),
        grid=(nc, N, nl),
        in_specs=[pl.BlockSpec((1, tc, tl), lambda ci, n, li: (n, ci, li)),
                  pl.BlockSpec((tc, 1), lambda ci, n, li: (ci, 0)),
                  pl.BlockSpec((tc, 1), lambda ci, n, li: (ci, 0))],
        out_specs=pl.BlockSpec((1, tc, tl), lambda ci, n, li: (n, ci, li)),
        compiler_params=pltpu.CompilerParams(
            dimension_semantics=("parallel", "parallel", "parallel")),
    )(x3, scale, shift)

    return y3.reshape(N, C, H, W)


def _reference(x, gamma, beta):
    # Pure-JAX reference of BatchNorm2d (batch stats, biased var, eps=1e-5).
    mean = jnp.mean(x, axis=(0, 2, 3), keepdims=True)
    var = jnp.mean((x - mean) ** 2, axis=(0, 2, 3), keepdims=True)
    g = gamma.reshape(1, -1, 1, 1)
    b = beta.reshape(1, -1, 1, 1)
    return (x - mean) / jnp.sqrt(var + _EPS) * g + b


if __name__ == "__main__":
    key = jax.random.PRNGKey(0)
    N, C, H, W = 2, 4, 16, 16
    x = jax.random.normal(key, (N, C, H, W), dtype=jnp.float32)

    # BatchNorm2d default affine init: weight = ones, bias = zeros.
    gamma = jnp.ones((C,), dtype=jnp.float32)
    beta = jnp.zeros((C,), dtype=jnp.float32)

    y = feature_normalization(x, gamma, beta)
    y = jax.block_until_ready(y)

    y_ref = _reference(x, gamma, beta)
    assert y.shape == (N, C, H, W)
    assert jnp.allclose(y, y_ref, atol=1e-4, rtol=1e-4), "mismatch vs reference"

    print("KERNEL_OK")
</pallas_src>

<mosaic_0001>
module attributes {stable_mosaic.version = 11 : i64} {
  func.func @_stats_kernel(%arg0: i32, %arg1: i32, %arg2: i32, %arg3: memref<1x4x256xf32, #tpu.memory_space<vmem>>, %arg4: memref<4x1xf32, #tpu.memory_space<vmem>>, %arg5: memref<4x1xf32, #tpu.memory_space<vmem>>, %arg6: memref<4x128xf32, #tpu.memory_space<vmem>>, %arg7: memref<4x128xf32, #tpu.memory_space<vmem>>) attributes {dimension_semantics = [#tpu.dimension_semantics<parallel>, #tpu.dimension_semantics<arbitrary>, #tpu.dimension_semantics<arbitrary>], iteration_bounds = array<i64: 1, 2, 1>, scalar_prefetch = 0 : i64, scratch_operands = 2 : i64, tpu.core_type = #tpu.core_type<tc>, window_params = [{transform_indices = @transform_0, window_bounds = array<i64: 1, 4, 256>}, {transform_indices = @transform_1, window_bounds = array<i64: 4, 1>}, {transform_indices = @transform_2, window_bounds = array<i64: 4, 1>}]} {
    %c0_i32 = arith.constant 0 : i32
    %0 = arith.cmpi eq, %arg1, %c0_i32 : i32
    %c0_i32_0 = arith.constant 0 : i32
    %1 = arith.cmpi eq, %arg2, %c0_i32_0 : i32
    %2 = arith.andi %0, %1 : i1
    %3 = arith.extui %2 : i1 to i32
    %c0_i32_1 = arith.constant 0 : i32
    %4 = arith.cmpi ne, %3, %c0_i32_1 : i32
    scf.if %4 {
      %cst = arith.constant 0.000000e+00 : f32
      %24 = vector.broadcast %cst : f32 to vector<4x128xf32>
      %c0_14 = arith.constant 0 : index
      %c0_15 = arith.constant 0 : index
      %25 = vector.load %arg6[%c0_14, %c0_15] : memref<4x128xf32, #tpu.memory_space<vmem>>, vector<4x128xf32>
      tpu.vector_store %arg6[%c0_14, %c0_15], %24 {strides = array<i32>} : memref<4x128xf32, #tpu.memory_space<vmem>>, vector<4x128xf32>,
      %cst_16 = arith.constant 0.000000e+00 : f32
      %26 = vector.broadcast %cst_16 : f32 to vector<4x128xf32>
      %c0_17 = arith.constant 0 : index
      %c0_18 = arith.constant 0 : index
      %27 = vector.load %arg7[%c0_17, %c0_18] : memref<4x128xf32, #tpu.memory_space<vmem>>, vector<4x128xf32>
      tpu.vector_store %arg7[%c0_17, %c0_18], %26 {strides = array<i32>} : memref<4x128xf32, #tpu.memory_space<vmem>>, vector<4x128xf32>,
    } else {
    }
    %c0 = arith.constant 0 : index
    %c0_2 = arith.constant 0 : index
    %c0_3 = arith.constant 0 : index
    %5 = vector.load %arg3[%c0, %c0_2, %c0_3] : memref<1x4x256xf32, #tpu.memory_space<vmem>>, vector<1x4x256xf32>
    %6 = vector.shape_cast %5 : vector<1x4x256xf32> to vector<4x256xf32>
    %c0_4 = arith.constant 0 : index
    %c0_5 = arith.constant 0 : index
    %7 = vector.load %arg6[%c0_4, %c0_5] : memref<4x128xf32, #tpu.memory_space<vmem>>, vector<4x128xf32>
    %c0_6 = arith.constant 0 : index
    %c0_7 = arith.constant 0 : index
    %8 = vector.load %arg7[%c0_6, %c0_7] : memref<4x128xf32, #tpu.memory_space<vmem>>, vector<4x128xf32>
    %9 = vector.extract_strided_slice %6 {offsets = [0, 0], sizes = [4, 128], strides = [1, 1]} : vector<4x256xf32> to vector<4x128xf32>
    %10 = arith.addf %7, %9 : vector<4x128xf32>
    %11 = arith.mulf %9, %9 : vector<4x128xf32>
    %12 = arith.addf %8, %11 : vector<4x128xf32>
    %13 = vector.extract_strided_slice %6 {offsets = [0, 128], sizes = [4, 128], strides = [1, 1]} : vector<4x256xf32> to vector<4x128xf32>
    %14 = arith.addf %10, %13 : vector<4x128xf32>
    %15 = arith.mulf %13, %13 : vector<4x128xf32>
    %16 = arith.addf %12, %15 : vector<4x128xf32>
    %c0_8 = arith.constant 0 : index
    %c0_9 = arith.constant 0 : index
    %17 = vector.load %arg6[%c0_8, %c0_9] : memref<4x128xf32, #tpu.memory_space<vmem>>, vector<4x128xf32>
    tpu.vector_store %arg6[%c0_8, %c0_9], %14 {strides = array<i32>} : memref<4x128xf32, #tpu.memory_space<vmem>>, vector<4x128xf32>,
    %c0_10 = arith.constant 0 : index
    %c0_11 = arith.constant 0 : index
    %18 = vector.load %arg7[%c0_10, %c0_11] : memref<4x128xf32, #tpu.memory_space<vmem>>, vector<4x128xf32>
    tpu.vector_store %arg7[%c0_10, %c0_11], %16 {strides = array<i32>} : memref<4x128xf32, #tpu.memory_space<vmem>>, vector<4x128xf32>,
    %c1_i32 = arith.constant 1 : i32
    %19 = arith.cmpi eq, %arg1, %c1_i32 : i32
    %c0_i32_12 = arith.constant 0 : i32
    %20 = arith.cmpi eq, %arg2, %c0_i32_12 : i32
    %21 = arith.andi %19, %20 : i1
    %22 = arith.extui %21 : i1 to i32
    %c0_i32_13 = arith.constant 0 : i32
    %23 = arith.cmpi ne, %22, %c0_i32_13 : i32
    scf.if %23 {
      %c0_14 = arith.constant 0 : index
      %c0_15 = arith.constant 0 : index
      %24 = vector.load %arg6[%c0_14, %c0_15] : memref<4x128xf32, #tpu.memory_space<vmem>>, vector<4x128xf32>
      %cst = arith.constant dense<0.000000e+00> : vector<4xf32>
      %25 = vector.multi_reduction <add>, %24, %cst [1] : vector<4x128xf32> to vector<4xf32>
      %26 = vector.shape_cast %25 : vector<4xf32> to vector<4x1xf32>
      %c0_16 = arith.constant 0 : index
      %c0_17 = arith.constant 0 : index
      %27 = vector.load %arg4[%c0_16, %c0_17] : memref<4x1xf32, #tpu.memory_space<vmem>>, vector<4x1xf32>
      tpu.vector_store %arg4[%c0_16, %c0_17], %26 {strides = array<i32>} : memref<4x1xf32, #tpu.memory_space<vmem>>, vector<4x1xf32>,
      %c0_18 = arith.constant 0 : index
      %c0_19 = arith.constant 0 : index
      %28 = vector.load %arg7[%c0_18, %c0_19] : memref<4x128xf32, #tpu.memory_space<vmem>>, vector<4x128xf32>
      %cst_20 = arith.constant dense<0.000000e+00> : vector<4xf32>
      %29 = vector.multi_reduction <add>, %28, %cst_20 [1] : vector<4x128xf32> to vector<4xf32>
      %30 = vector.shape_cast %29 : vector<4xf32> to vector<4x1xf32>
      %c0_21 = arith.constant 0 : index
      %c0_22 = arith.constant 0 : index
      %31 = vector.load %arg5[%c0_21, %c0_22] : memref<4x1xf32, #tpu.memory_space<vmem>>, vector<4x1xf32>
      tpu.vector_store %arg5[%c0_21, %c0_22], %30 {strides = array<i32>} : memref<4x1xf32, #tpu.memory_space<vmem>>, vector<4x1xf32>,
    } else {
    }
    return
  }
  func.func @transform_0(%arg0: i32, %arg1: i32, %arg2: i32) -> (i32, i32, i32) {
    %c0_i32 = arith.constant 0 : i32
    return %arg1, %arg0, %arg2 : i32, i32, i32
  }
  func.func @transform_1(%arg0: i32, %arg1: i32, %arg2: i32) -> (i32, i32) {
    %c0_i32 = arith.constant 0 : i32
    %c0_i32_0 = arith.constant 0 : i32
    return %arg0, %c0_i32 : i32, i32
  }
  func.func @transform_2(%arg0: i32, %arg1: i32, %arg2: i32) -> (i32, i32) {
    %c0_i32 = arith.constant 0 : i32
    %c0_i32_0 = arith.constant 0 : i32
    return %arg0, %c0_i32 : i32, i32
  }
}

</mosaic_0001>

<llo_original>
// kernel: tpu_custom_call.1
$region0: #{tpu_custom_call.1}
  #allocation0 [shape = 'u32[]', space=smem, size = 0x4, offset = 0x4, fixed_abs, tag = 'smem constant byte address 0x4 - core index']
  #allocation1 [shape = 'u32[144,128]{1,0:T(1,128)}', space=vmem, size = 0x12000, scoped, tag = 'internal scratch']
  #allocation2 [shape = 'f32[4,128]{1,0:T(4,128)}', space=vmem, size = 0x800, scoped, tag = 'scratch operand']
  #allocation3 [shape = 'f32[4,128]{1,0:T(4,128)}', space=vmem, size = 0x800, scoped, tag = 'scratch operand']
  %s0 = inlined_call_operand.hbm [shape: f32[2,4,256], index: 0, kind: input, shape index: {}]
  %s1 = inlined_call_operand.vmem [shape: f32[4,1], index: 1, kind: output, shape index: {0}]
  %s2 = inlined_call_operand.vmem [shape: f32[4,1], index: 2, kind: output, shape index: {1}]
  %3 = xla_tuple %s1, %s2
  %s4 = sld [smem:[#allocation0]]
  $region57: #{tpu_custom_call.1} parent=0
    _
  %s6 = ssub.s32 1, %s4
  %s7 = scalar_select 0, %s6, %s4
  $region1: #{tpu_custom_call.1} parent=0
    #allocation4 [shape = 'u8[8192]{0}', space=vmem, size = 0x2000, scoped, tag = 'input window, operand 0']
    #allocation5 [shape = 's32[2]{0}', space=sflag, size = 0x8, scoped, tag = 'scoped memory for tpu_custom_call.1']
    %8 = vsyncpa [#allocation5], 0
    %s9 = scalar_lea.sflag [#allocation5], 1
    %10 = vsyncpa %s9, 0
    loop: start=0, step=1, limit=4
    $region2: #{tpu_custom_call.1} parent=1 // loop_pre_header
      _
    $region3: #{tpu_custom_call.1} parent=1 // loop_header
      %s12 = sphi 0, %s16
      %p13 = scmp.ge.s32.totalorder %s12, 4
      %s19 = sphi 0, %s38
      %s20 = sphi 0, %s34
      %s21 = sphi 0, %s30
      %s22 = sphi 0, %s19
      %s23 = sphi 0, %s20
      %s24 = sphi 0, %s21
      %s25 = sphi 0, %s22
      %s26 = sphi 0, %s23
      %s27 = sphi 0, %s24
      %s45 = sphi 0, %s47
      %s48 = sphi 0, %s45
      %s49 = sphi 0, %s48
      %s65 = sphi 0, %s49
      %s71 = sphi 0, %s73
      %s74 = sphi 0, %s71
      %s75 = sphi 0, %s74
      %s91 = sphi 0, %s75
      %s97 = sphi 0, %s99
      %s100 = sphi 0, %s97
      %s101 = sphi 0, %s100
      %s117 = sphi 0, %s101
    $region4: #{tpu_custom_call.1} parent=1 // loop_header_branch
      %15 = sbr.rel (%p13) target = $region8
    $region5: #{tpu_custom_call.1} parent=1 // loop_body
      %s17 = ssub.s32 %s12, 1
      %s18 = ssub.s32 %s12, 2
      %s28 = sadd.s32 1, %s21
      %p29 = scmp.ge.s32.totalorder %s28, 1
      %s30 = scalar_select %p29, 0, %s28
      %s31 = sadd.s32 1, %s20
      %s32 = scalar_select %p29, %s31, %s20
      %p33 = scmp.ge.s32.totalorder %s32, 2
      %s34 = scalar_select %p33, 0, %s32
      %s35 = sadd.s32 1, %s19
      %s36 = scalar_select %p33, %s35, %s19
      %p37 = scmp.ge.s32.totalorder %s36, 1
      %s38 = scalar_select %p37, 0, %s36
      %s39 = ssub.s32 %s20, %s34
      %s40 = ssub.s32 %s19, %s38
      %s41 = sor.u32 %s39, %s40
      %s42 = ssub.s32 %s21, %s30
      %s43 = sor.u32 %s41, %s42
      %p44 = scmp.eq.s32.totalorder %s43, 0
      %s46 = sadd.s32 %s45, 1
      %s47 = scalar_select %p44, %s45, %s46
      %p50 = pneg %p44
      %p51 = scmp.eq.s32.totalorder %s12, 1
      %p52 = por %p50, %p51
      %p53 = scmp.ne.s32.totalorder %s45, %s48
      %p54 = scmp.eq.s32.totalorder %s12, 0
      %p55 = por %p53, %p54
      %p56 = scmp.ne.s32.totalorder %s45, %s48
      %p57 = scmp.eq.s32.totalorder %s17, 1
      %p58 = por %p56, %p57
      %p59 = scmp.ne.s32.totalorder %s48, %s49
      %p60 = scmp.eq.s32.totalorder %s17, 0
      %p61 = por %p59, %p60
      %p62 = scmp.ne.s32.totalorder %s48, %s49
      %p63 = scmp.eq.s32.totalorder %s18, 1
      %p64 = por %p62, %p63
      %p66 = scmp.ne.s32.totalorder %s49, %s65
      %p67 = scmp.eq.s32.totalorder %s18, 0
      %p68 = por %p66, %p67
      %s69 = ssub.s32 %s19, %s38
      %p70 = scmp.eq.s32.totalorder %s69, 0
      %s72 = sadd.s32 %s71, 1
      %s73 = scalar_select %p70, %s71, %s72
      %p76 = pneg %p70
      %p77 = scmp.eq.s32.totalorder %s12, 1
      %p78 = por %p76, %p77
      %p79 = scmp.ne.s32.totalorder %s71, %s74
      %p80 = scmp.eq.s32.totalorder %s12, 0
      %p81 = por %p79, %p80
      %p82 = scmp.ne.s32.totalorder %s71, %s74
      %p83 = scmp.eq.s32.totalorder %s17, 1
      %p84 = por %p82, %p83
      %p85 = scmp.ne.s32.totalorder %s74, %s75
      %p86 = scmp.eq.s32.totalorder %s17, 0
      %p87 = por %p85, %p86
      %p88 = scmp.ne.s32.totalorder %s74, %s75
      %p89 = scmp.eq.s32.totalorder %s18, 1
      %p90 = por %p88, %p89
      %p92 = scmp.ne.s32.totalorder %s75, %s91
      %p93 = scmp.eq.s32.totalorder %s18, 0
      %p94 = por %p92, %p93
      %s95 = ssub.s32 %s19, %s38
      %p96 = scmp.eq.s32.totalorder %s95, 0
      %s98 = sadd.s32 %s97, 1
      %s99 = scalar_select %p96, %s97, %s98
      %p102 = pneg %p96
      %p103 = scmp.eq.s32.totalorder %s12, 1
      %p104 = por %p102, %p103
      %p105 = scmp.ne.s32.totalorder %s97, %s100
      %p106 = scmp.eq.s32.totalorder %s12, 0
      %p107 = por %p105, %p106
      %p108 = scmp.ne.s32.totalorder %s97, %s100
      %p109 = scmp.eq.s32.totalorder %s17, 1
      %p110 = por %p108, %p109
      %p111 = scmp.ne.s32.totalorder %s100, %s101
      %p112 = scmp.eq.s32.totalorder %s17, 0
      %p113 = por %p111, %p112
      %p114 = scmp.ne.s32.totalorder %s100, %s101
      %p115 = scmp.eq.s32.totalorder %s18, 1
      %p116 = por %p114, %p115
      %p118 = scmp.ne.s32.totalorder %s101, %s117
      %p119 = scmp.eq.s32.totalorder %s18, 0
      %p120 = por %p118, %p119
      %p121 = scmp.le.s32.totalorder 1, %s12
      %p122 = scmp.lt.s32.totalorder %s12, 3
      %p123 = pnand %p121, %p122
      %p124 = pneg %p123
      // Predicated region
      $region9: #{tpu_custom_call.1} parent=5 // pred_check
        _
      $region10: #{tpu_custom_call.1} parent=5 // pred_check_branch
        %126 = sbr.rel (%p123) target = $region12
      $region11: #{tpu_custom_call.1} parent=5 // pred_region
        %s127 = ssub.s32 %s12, 1
      $region12: #{tpu_custom_call.1} parent=5 // pred_fallthru
        _
      %p128 = scmp.lt.s32.totalorder %s12, 2
      // Predicated region
      $region13: #{tpu_custom_call.1} parent=5 // pred_check
        %p129 = pneg %p128
      $region14: #{tpu_custom_call.1} parent=5 // pred_check_branch
        %131 = sbr.rel (%p129) target = $region16
      $region15: #{tpu_custom_call.1} parent=5 // pred_region
        // Predicated region
        $region17: #{tpu_custom_call.1} parent=15 // pred_check
          %p132 = pneg %p55
        $region18: #{tpu_custom_call.1} parent=15 // pred_check_branch
          %134 = sbr.rel (%p132) target = $region20
        $region19: #{tpu_custom_call.1} parent=15 // pred_region
          %s135 = sand.u32 %s45, 1
          %s136 = scalar_lea.sflag [#allocation5], %s135
          %s137 = sand.u32 %s45, 1
          %s138 = smul.addr %s137, 8
          %s139 = scalar_lea.vmem [#allocation4], %s138
          %s140 = smul.u32 2, %s21
          %s142 = ssub.s32 128, 128
          %143 = vsyncadd %s136, %s142
          %s144 = smul.addr %s19, 2
          %s145 = sadd.s32 %s140, %s144
          %s146 = smul.addr %s20, 2
          %s147 = sadd.s32 %s145, %s146
          %s148 = smul.addr %s147, 64
          %s149 = scalar_lea.hbm %s0, %s148
          %s151 = sshll.u32 %s139, 4
          %s152 = int_to_ptr.vmem [resolvable:$true] %s151
          %154 = dma.hbm_to_vmem [thread:$0]  %s149, 128, %s152, %s136
        $region20: #{tpu_custom_call.1} parent=15 // pred_fallthru
          _
      $region16: #{tpu_custom_call.1} parent=5 // pred_fallthru
        _
      %p155 = scmp.le.s32.totalorder 1, %s12
      %p156 = scmp.lt.s32.totalorder %s12, 3
      %p157 = pnand %p155, %p156
      %p158 = pneg %p157
      // Predicated region
      $region21: #{tpu_custom_call.1} parent=5 // pred_check
        _
      $region22: #{tpu_custom_call.1} parent=5 // pred_check_branch
        %160 = sbr.rel (%p157) target = $region24
      $region23: #{tpu_custom_call.1} parent=5 // pred_region
        %s161 = ssub.s32 %s12, 1
        %s162 = sand.u32 %s48, 1
        %s163 = scalar_lea.sflag [#allocation5], %s162
        %s164 = sand.u32 %s48, 1
        %s165 = smul.addr %s164, 8
        %s166 = scalar_lea.vmem [#allocation4], %s165
        // Predicated region
        $region25: #{tpu_custom_call.1} parent=23 // pred_check
          %p167 = pneg %p61
        $region26: #{tpu_custom_call.1} parent=23 // pred_check_branch
          %169 = sbr.rel (%p167) target = $region28
        $region27: #{tpu_custom_call.1} parent=23 // pred_region
          %170 = dma.done %s163, 128
        $region28: #{tpu_custom_call.1} parent=23 // pred_fallthru
          _
        %s171 = sand.u32 %s48, 1
        %s172 = scalar_lea.sflag [#allocation5], %s171
        %s173 = sand.u32 %s48, 1
        %s174 = smul.addr %s173, 8
        %s175 = scalar_lea.vmem [#allocation4], %s174
        %p176 = pneg %p61
        %p177 = pneg %p58
        %p178 = pneg %p87
        %p179 = pneg %p84
        %p180 = scmp.lt.s32.totalorder %s22, 0
        %s181 = scalar_select %p180, %s22, 0
        %s182 = smul.addr %s181, 4
        %s183 = scalar_lea.vmem %s1, %s182
        %p184 = pneg %p113
        %p185 = pneg %p110
        %p186 = scmp.lt.s32.totalorder %s22, 0
        %s187 = scalar_select %p186, %s22, 0
        %s188 = smul.addr %s187, 4
        %s189 = scalar_lea.vmem %s2, %s188
        %s190 = smul.u32 2, %s24
        %p191 = scmp.lt.s32.totalorder %s22, 0
        %s192 = scalar_select %p191, %s22, 0
        %s193 = smul.addr %s192, 4
        %s194 = scalar_lea.vmem %s1, %s193
        %p195 = scmp.lt.s32.totalorder %s22, 0
        %s196 = scalar_select %p195, %s22, 0
        %s197 = smul.addr %s196, 4
        %s198 = scalar_lea.vmem %s2, %s197
        %p199 = scmp.eq.s32.totalorder %s23, 0
        %p200 = scmp.eq.s32.totalorder %s24, 0
        %p201 = pnand %p199, %p200
        %p202 = pneg %p201
        // Predicated region
        $region29: #{tpu_custom_call.1} parent=23 // pred_check
          _
        $region30: #{tpu_custom_call.1} parent=23 // pred_check_branch
          %204 = sbr.rel (%p201) target = $region32
        $region31: #{tpu_custom_call.1} parent=23 // pred_region
          %205 = vst [vmem:[#allocation2] sm:$0xf] 0.0
          %206 = vst [vmem:[#allocation3] sm:$0xf] 0.0
        $region32: #{tpu_custom_call.1} parent=23 // pred_fallthru
          _
        %v207 = vld [vmem:[%s166] sm:$0xff]
        %v208 = vld [vmem:[#allocation2] sm:$0xf]
        %v209 = vld [vmem:[#allocation3] sm:$0xf]
        %v210 = vadd.f32 %v208, %v207
        %v211 = vmul.f32 %v207, %v207
        %v212 = vadd.f32 %v209, %v211
        %v214 = vcombine.high %v207, %v207
        %v216 = vadd.f32 %v210, %v214
        %v217 = vrot.slane %v207, 4
        %v219 = vmul.f32 %v217, %v217
        %v220 = vadd.f32 %v212, %v219
        %221 = vst [vmem:[#allocation2] sm:$0xf] %v216
        %222 = vst [vmem:[#allocation3] sm:$0xf] %v220
        %p223 = scmp.eq.s32.totalorder %s23, 1
        %p224 = pnand %p223, %p200
        %p225 = pneg %p224
        // Predicated region
        $region33: #{tpu_custom_call.1} parent=23 // pred_check
          _
        $region34: #{tpu_custom_call.1} parent=23 // pred_check_branch
          %227 = sbr.rel (%p224) target = $region36
        $region35: #{tpu_custom_call.1} parent=23 // pred_region
          %v228 = vld [vmem:[#allocation2] sm:$0xf]
          %vm229 = vcmask 1043456
          %v230 = vsel %vm229, %v228, 0.0
          %231 = vadd.xlane.f32.xlu0 %v230
          %v232 = vpop.xlane.xlu0 %231
          %vm233 = vcmask 3072
          %234 = vst.msk [vmem:[%s194] sm:$0xf] %vm233, %v232
          %v235 = vld [vmem:[#allocation3] sm:$0xf]
          %v236 = vsel %vm229, %v235, 0.0
          %237 = vadd.xlane.f32.xlu0 %v236
          %v238 = vpop.xlane.xlu0 %237
          %239 = vst.msk [vmem:[%s198] sm:$0xf] %vm233, %v238
        $region36: #{tpu_custom_call.1} parent=23 // pred_fallthru
          _
        %p240 = scmp.lt.s32.totalorder %s22, 0
        %s241 = scalar_select %p240, %s22, 0
        %s242 = smul.addr %s241, 4
        %s243 = scalar_lea.vmem %s1, %s242
        %p244 = scmp.lt.s32.totalorder %s22, 0
        %s245 = scalar_select %p244, %s22, 0
        %s246 = smul.addr %s245, 4
        %s247 = scalar_lea.vmem %s2, %s246
        // Predicated region
        $region37: #{tpu_custom_call.1} parent=23 // pred_check
          %p248 = pneg %p84
        $region38: #{tpu_custom_call.1} parent=23 // pred_check_branch
          %250 = sbr.rel (%p248) target = $region40
        $region39: #{tpu_custom_call.1} parent=23 // pred_region
          _
        $region40: #{tpu_custom_call.1} parent=23 // pred_fallthru
          _
        // Predicated region
        $region41: #{tpu_custom_call.1} parent=23 // pred_check
          %p251 = pneg %p110
        $region42: #{tpu_custom_call.1} parent=23 // pred_check_branch
          %253 = sbr.rel (%p251) target = $region44
        $region43: #{tpu_custom_call.1} parent=23 // pred_region
          _
        $region44: #{tpu_custom_call.1} parent=23 // pred_fallthru
          _
        // Predicated region
        $region45: #{tpu_custom_call.1} parent=23 // pred_check
          %p254 = pneg %p84
        $region46: #{tpu_custom_call.1} parent=23 // pred_check_branch
          %256 = sbr.rel (%p254) target = $region48
        $region47: #{tpu_custom_call.1} parent=23 // pred_region
          %p257 = scmp.lt.s32.totalorder %s22, 0
          %s258 = scalar_select %p257, %s22, 0
          %s259 = smul.addr %s258, 4
          %s260 = scalar_lea.vmem %s1, %s259
        $region48: #{tpu_custom_call.1} parent=23 // pred_fallthru
          _
        // Predicated region
        $region49: #{tpu_custom_call.1} parent=23 // pred_check
          %p261 = pneg %p110
        $region50: #{tpu_custom_call.1} parent=23 // pred_check_branch
          %263 = sbr.rel (%p261) target = $region52
        $region51: #{tpu_custom_call.1} parent=23 // pred_region
          %p264 = scmp.lt.s32.totalorder %s22, 0
          %s265 = scalar_select %p264, %s22, 0
          %s266 = smul.addr %s265, 4
          %s267 = scalar_lea.vmem %s2, %s266
        $region52: #{tpu_custom_call.1} parent=23 // pred_fallthru
          _
      $region24: #{tpu_custom_call.1} parent=5 // pred_fallthru
        _
      %p268 = scmp.le.s32.totalorder 2, %s12
      // Predicated region
      $region53: #{tpu_custom_call.1} parent=5 // pred_check
        %p269 = pneg %p268
      $region54: #{tpu_custom_call.1} parent=5 // pred_check_branch
        %271 = sbr.rel (%p269) target = $region56
      $region55: #{tpu_custom_call.1} parent=5 // pred_region
        %s272 = ssub.s32 %s12, 2
      $region56: #{tpu_custom_call.1} parent=5 // pred_fallthru
        _
    $region6: #{tpu_custom_call.1} parent=1 // loop_footer
      %s16 = sadd.s32 1, %s12
    $region7: #{tpu_custom_call.1} parent=1 // loop_footer_branch
      %11 = sbr.rel target = $region3
    $region8: #{tpu_custom_call.1} parent=1 // loop_exit
      _
    %273 = vsyncpa [#allocation5], 1
    %s274 = scalar_lea.sflag [#allocation5], 1
    %275 = vsyncpa %s274, 1

</llo_original>
